<compile_context>
chip_gen: v5e
topology: v5e:2x2
jax: 0.10.0
libtpu: 0.0.40
codegen_flags: <defaults>
</compile_context>

<pallas_src>
import functools

import jax
import jax.numpy as jnp
import numpy as np
from jax.experimental import pallas as pl
from jax.experimental.pallas import tpu as pltpu

EPS = 1e-7


def _macro_f1_kernel(yp_ref, yt_ref, o_ref, tp_ref, fp_ref, t1_ref,
                     *, n_total, num_classes, eps, needs_mask):
    step = pl.program_id(0)

    @pl.when(step == 0)
    def _():
        tp_ref[...] = jnp.zeros_like(tp_ref)
        fp_ref[...] = jnp.zeros_like(fp_ref)
        t1_ref[...] = jnp.zeros_like(t1_ref)

    yp = yp_ref[...]                     # (C, TN) logits, f32
    yt = yt_ref[...]                     # (C, TN) labels, f32
    c, tn = yp.shape

    # argmax over classes (axis 0), first occurrence on ties.  Softmax is
    # monotonic, so computing it would not change the argmax; skip the exp.
    cls_iota = jax.lax.broadcasted_iota(jnp.int32, (c, tn), 0)
    col_max = jnp.max(yp, axis=0, keepdims=True)                     # (1, TN)
    first_idx = jnp.min(jnp.where(yp == col_max, cls_iota, num_classes),
                        axis=0, keepdims=True)                       # (1, TN)
    pred = (cls_iota == first_idx).astype(jnp.float32)               # one-hot

    t1 = (yt == 1.0).astype(jnp.float32)                             # y_true == 1
    t0 = (yt == 0.0).astype(jnp.float32)                             # y_true == 0

    if needs_mask:
        # zero out lanes that fall past the real batch size (partial tile)
        lane = jax.lax.broadcasted_iota(jnp.int32, (1, tn), 1)
        valid = ((lane + step * tn) < n_total).astype(jnp.float32)   # (1, TN)
        t1 = t1 * valid
        t0 = t0 * valid

    # per-class partial counts for this tile, accumulated across the grid
    tp_ref[...] += jnp.sum(pred * t1, axis=1, keepdims=True)         # (C, 1)
    fp_ref[...] += jnp.sum(pred * t0, axis=1, keepdims=True)         # (C, 1)
    t1_ref[...] += jnp.sum(t1, axis=1, keepdims=True)                # (C, 1)

    @pl.when(step == pl.num_programs(0) - 1)
    def _():
        tp = tp_ref[...]
        fp = fp_ref[...]
        fn = t1_ref[...] - tp            # FN = #(y_true==1) - TP
        precision = tp / (tp + fp + eps)
        recall = tp / (tp + fn + eps)
        f1 = 2.0 * precision * recall / (precision + recall + eps)   # (C, 1)
        o_ref[...] = jnp.sum(f1, axis=0, keepdims=True) * jnp.float32(1.0 / num_classes)


@functools.partial(jax.jit, static_argnames=("block_n",))
def macro_f1(y_pred, y_true, *, block_n=1024):
    """y_pred: (N, C) logits; y_true: (N, C) {0,1} matrix.  Returns scalar f32.

    block_n must be a multiple of 128 (lane width); larger tiles amortize the
    ~0.35us per-grid-step overhead and each (C, block_n) f32 tile is tiny.
    """
    n, c = y_pred.shape
    # lane-dense presentation: classes -> sublanes, batch -> lanes
    yp_t = jnp.transpose(y_pred.astype(jnp.float32))                 # (C, N)
    yt_t = jnp.transpose(y_true.astype(jnp.float32))                 # (C, N)

    tn = n if n <= block_n else block_n
    grid = (pl.cdiv(n, tn),)
    needs_mask = (n % tn) != 0                                       # static

    kernel = functools.partial(_macro_f1_kernel, n_total=n, num_classes=c,
                               eps=EPS, needs_mask=needs_mask)

    out = pl.pallas_call(
        kernel,
        out_shape=jax.ShapeDtypeStruct((1, 1), jnp.float32),
        grid_spec=pltpu.PrefetchScalarGridSpec(
            num_scalar_prefetch=0,
            grid=grid,
            in_specs=[
                pl.BlockSpec((c, tn), lambda i: (0, i)),             # y_pred^T
                pl.BlockSpec((c, tn), lambda i: (0, i)),             # y_true^T
            ],
            out_specs=pl.BlockSpec((1, 1), lambda i: (0, 0)),        # output-resident
            scratch_shapes=[
                pltpu.VMEM((c, 1), jnp.float32),                     # TP
                pltpu.VMEM((c, 1), jnp.float32),                     # FP
                pltpu.VMEM((c, 1), jnp.float32),                     # sum(y_true==1)
            ],
        ),
        compiler_params=pltpu.CompilerParams(
            dimension_semantics=("arbitrary",),                      # batch axis is a reduction
        ),
    )(yp_t, yt_t)
    return out[0, 0]


def macro_f1_ref(y_pred, y_true, eps=EPS):
    """Pure-JAX reference mirroring the PyTorch forward exactly."""
    y_pred_sm = jax.nn.softmax(y_pred, axis=1)
    pred_cls = jnp.argmax(y_pred_sm, axis=1)
    y_true = y_true.astype(jnp.float32)
    f1s = []
    for i in range(y_pred.shape[1]):
        tp = jnp.sum((pred_cls == i) & (y_true[:, i] == 1)).astype(jnp.float32)
        fp = jnp.sum((pred_cls == i) & (y_true[:, i] == 0)).astype(jnp.float32)
        fn = jnp.sum((pred_cls != i) & (y_true[:, i] == 1)).astype(jnp.float32)
        precision = tp / (tp + fp + eps)
        recall = tp / (tp + fn + eps)
        f1s.append(2.0 * precision * recall / (precision + recall + eps))
    return jnp.mean(jnp.stack(f1s))


if __name__ == "__main__":
    key = jax.random.PRNGKey(0)

    # Case 1: N a multiple of the tile (exercises multi-step accumulation).
    N, C = 256, 8
    kp, kt, key = (*jax.random.split(key, 2), key)
    y_pred = jax.random.normal(kp, (N, C), dtype=jnp.float32)
    labels = jax.random.randint(kt, (N,), 0, C)
    y_true = jax.nn.one_hot(labels, C, dtype=jnp.float32)

    out = jax.block_until_ready(macro_f1(y_pred, y_true, block_n=128))
    ref = macro_f1_ref(y_pred, y_true)
    np.testing.assert_allclose(np.asarray(out), np.asarray(ref),
                               rtol=1e-5, atol=1e-6)

    # Case 2: ragged N (exercises the partial-tile lane mask).
    N2 = 200
    kp2, kt2 = jax.random.split(jax.random.PRNGKey(1))
    y_pred2 = jax.random.normal(kp2, (N2, C), dtype=jnp.float32)
    labels2 = jax.random.randint(kt2, (N2,), 0, C)
    y_true2 = jax.nn.one_hot(labels2, C, dtype=jnp.float32)

    out2 = jax.block_until_ready(macro_f1(y_pred2, y_true2, block_n=128))
    ref2 = macro_f1_ref(y_pred2, y_true2)
    np.testing.assert_allclose(np.asarray(out2), np.asarray(ref2),
                               rtol=1e-5, atol=1e-6)

    print("KERNEL_OK")
</pallas_src>

<mosaic_0001>
module attributes {stable_mosaic.version = 11 : i64} {
  func.func @_macro_f1_kernel(%arg0: i32, %arg1: memref<8x128xf32, #tpu.memory_space<vmem>>, %arg2: memref<8x128xf32, #tpu.memory_space<vmem>>, %arg3: memref<1x1xf32, #tpu.memory_space<vmem>>, %arg4: memref<8x1xf32, #tpu.memory_space<vmem>>, %arg5: memref<8x1xf32, #tpu.memory_space<vmem>>, %arg6: memref<8x1xf32, #tpu.memory_space<vmem>>) attributes {dimension_semantics = [#tpu.dimension_semantics<arbitrary>], iteration_bounds = array<i64: 2>, scalar_prefetch = 0 : i64, scratch_operands = 3 : i64, tpu.core_type = #tpu.core_type<tc>, window_params = [{transform_indices = @transform_0, window_bounds = array<i64: 8, 128>}, {transform_indices = @transform_1, window_bounds = array<i64: 8, 128>}, {pipeline_mode = #tpu.pipeline_mode<synchronous>, transform_indices = @transform_2, window_bounds = array<i64: 1, 1>}]} {
    %c0_i32 = arith.constant 0 : i32
    %0 = arith.cmpi eq, %arg0, %c0_i32 : i32
    %1 = arith.extui %0 : i1 to i32
    %c0_i32_0 = arith.constant 0 : i32
    %2 = arith.cmpi ne, %1, %c0_i32_0 : i32
    scf.if %2 {
      %cst_23 = arith.constant 0.000000e+00 : f32
      %46 = vector.broadcast %cst_23 : f32 to vector<8x1xf32>
      %c0_24 = arith.constant 0 : index
      %c0_25 = arith.constant 0 : index
      %47 = vector.load %arg4[%c0_24, %c0_25] : memref<8x1xf32, #tpu.memory_space<vmem>>, vector<8x1xf32>
      tpu.vector_store %arg4[%c0_24, %c0_25], %46 {strides = array<i32>} : memref<8x1xf32, #tpu.memory_space<vmem>>, vector<8x1xf32>,
      %cst_26 = arith.constant 0.000000e+00 : f32
      %48 = vector.broadcast %cst_26 : f32 to vector<8x1xf32>
      %c0_27 = arith.constant 0 : index
      %c0_28 = arith.constant 0 : index
      %49 = vector.load %arg5[%c0_27, %c0_28] : memref<8x1xf32, #tpu.memory_space<vmem>>, vector<8x1xf32>
      tpu.vector_store %arg5[%c0_27, %c0_28], %48 {strides = array<i32>} : memref<8x1xf32, #tpu.memory_space<vmem>>, vector<8x1xf32>,
      %cst_29 = arith.constant 0.000000e+00 : f32
      %50 = vector.broadcast %cst_29 : f32 to vector<8x1xf32>
      %c0_30 = arith.constant 0 : index
      %c0_31 = arith.constant 0 : index
      %51 = vector.load %arg6[%c0_30, %c0_31] : memref<8x1xf32, #tpu.memory_space<vmem>>, vector<8x1xf32>
      tpu.vector_store %arg6[%c0_30, %c0_31], %50 {strides = array<i32>} : memref<8x1xf32, #tpu.memory_space<vmem>>, vector<8x1xf32>,
    } else {
    }
    %c0 = arith.constant 0 : index
    %c0_1 = arith.constant 0 : index
    %3 = vector.load %arg1[%c0, %c0_1] : memref<8x128xf32, #tpu.memory_space<vmem>>, vector<8x128xf32>
    %c0_2 = arith.constant 0 : index
    %c0_3 = arith.constant 0 : index
    %4 = vector.load %arg2[%c0_2, %c0_3] : memref<8x128xf32, #tpu.memory_space<vmem>>, vector<8x128xf32>
    %5 = tpu.iota {dimensions = array<i32: 0>} : vector<8x128xi32>
    %cst = arith.constant dense<0xFF800000> : vector<128xf32>
    %6 = vector.multi_reduction <maximumf>, %3, %cst [0] : vector<8x128xf32> to vector<128xf32>
    %7 = vector.shape_cast %6 : vector<128xf32> to vector<1x128xf32>
    %8 = vector.broadcast %7 : vector<1x128xf32> to vector<8x128xf32>
    %9 = arith.cmpf oeq, %3, %8 : vector<8x128xf32>
    %c8_i32 = arith.constant 8 : i32
    %10 = vector.broadcast %c8_i32 : i32 to vector<8x128xi32>
    %11 = arith.select %9, %5, %10 : vector<8x128xi1>, vector<8x128xi32>
    %cst_4 = arith.constant dense<2147483647> : vector<128xi32>
    %12 = vector.multi_reduction <minsi>, %11, %cst_4 [0] : vector<8x128xi32> to vector<128xi32>
    %13 = vector.shape_cast %12 : vector<128xi32> to vector<1x128xi32>
    %14 = vector.broadcast %13 : vector<1x128xi32> to vector<8x128xi32>
    %15 = arith.cmpi eq, %5, %14 : vector<8x128xi32>
    %16 = arith.extui %15 : vector<8x128xi1> to vector<8x128xi32>
    %17 = arith.sitofp %16 : vector<8x128xi32> to vector<8x128xf32>
    %cst_5 = arith.constant 1.000000e+00 : f32
    %18 = vector.broadcast %cst_5 : f32 to vector<8x128xf32>
    %19 = arith.cmpf oeq, %4, %18 : vector<8x128xf32>
    %20 = arith.extui %19 : vector<8x128xi1> to vector<8x128xi32>
    %21 = arith.sitofp %20 : vector<8x128xi32> to vector<8x128xf32>
    %cst_6 = arith.constant 0.000000e+00 : f32
    %22 = vector.broadcast %cst_6 : f32 to vector<8x128xf32>
    %23 = arith.cmpf oeq, %4, %22 : vector<8x128xf32>
    %24 = arith.extui %23 : vector<8x128xi1> to vector<8x128xi32>
    %25 = arith.sitofp %24 : vector<8x128xi32> to vector<8x128xf32>
    %c0_7 = arith.constant 0 : index
    %c0_8 = arith.constant 0 : index
    %26 = vector.load %arg4[%c0_7, %c0_8] : memref<8x1xf32, #tpu.memory_space<vmem>>, vector<8x1xf32>
    %27 = arith.mulf %17, %21 : vector<8x128xf32>
    %cst_9 = arith.constant dense<0.000000e+00> : vector<8xf32>
    %28 = vector.multi_reduction <add>, %27, %cst_9 [1] : vector<8x128xf32> to vector<8xf32>
    %29 = vector.shape_cast %28 : vector<8xf32> to vector<8x1xf32>
    %30 = arith.addf %26, %29 : vector<8x1xf32>
    %c0_10 = arith.constant 0 : index
    %c0_11 = arith.constant 0 : index
    %31 = vector.load %arg4[%c0_10, %c0_11] : memref<8x1xf32, #tpu.memory_space<vmem>>, vector<8x1xf32>
    tpu.vector_store %arg4[%c0_10, %c0_11], %30 {strides = array<i32>} : memref<8x1xf32, #tpu.memory_space<vmem>>, vector<8x1xf32>,
    %c0_12 = arith.constant 0 : index
    %c0_13 = arith.constant 0 : index
    %32 = vector.load %arg5[%c0_12, %c0_13] : memref<8x1xf32, #tpu.memory_space<vmem>>, vector<8x1xf32>
    %33 = arith.mulf %17, %25 : vector<8x128xf32>
    %cst_14 = arith.constant dense<0.000000e+00> : vector<8xf32>
    %34 = vector.multi_reduction <add>, %33, %cst_14 [1] : vector<8x128xf32> to vector<8xf32>
    %35 = vector.shape_cast %34 : vector<8xf32> to vector<8x1xf32>
    %36 = arith.addf %32, %35 : vector<8x1xf32>
    %c0_15 = arith.constant 0 : index
    %c0_16 = arith.constant 0 : index
    %37 = vector.load %arg5[%c0_15, %c0_16] : memref<8x1xf32, #tpu.memory_space<vmem>>, vector<8x1xf32>
    tpu.vector_store %arg5[%c0_15, %c0_16], %36 {strides = array<i32>} : memref<8x1xf32, #tpu.memory_space<vmem>>, vector<8x1xf32>,
    %c0_17 = arith.constant 0 : index
    %c0_18 = arith.constant 0 : index
    %38 = vector.load %arg6[%c0_17, %c0_18] : memref<8x1xf32, #tpu.memory_space<vmem>>, vector<8x1xf32>
    %cst_19 = arith.constant dense<0.000000e+00> : vector<8xf32>
    %39 = vector.multi_reduction <add>, %21, %cst_19 [1] : vector<8x128xf32> to vector<8xf32>
    %40 = vector.shape_cast %39 : vector<8xf32> to vector<8x1xf32>
    %41 = arith.addf %38, %40 : vector<8x1xf32>
    %c0_20 = arith.constant 0 : index
    %c0_21 = arith.constant 0 : index
    %42 = vector.load %arg6[%c0_20, %c0_21] : memref<8x1xf32, #tpu.memory_space<vmem>>, vector<8x1xf32>
    tpu.vector_store %arg6[%c0_20, %c0_21], %41 {strides = array<i32>} : memref<8x1xf32, #tpu.memory_space<vmem>>, vector<8x1xf32>,
    %c1_i32 = arith.constant 1 : i32
    %43 = arith.cmpi eq, %arg0, %c1_i32 : i32
    %44 = arith.extui %43 : i1 to i32
    %c0_i32_22 = arith.constant 0 : i32
    %45 = arith.cmpi ne, %44, %c0_i32_22 : i32
    scf.if %45 {
      %c0_23 = arith.constant 0 : index
      %c0_24 = arith.constant 0 : index
      %46 = vector.load %arg4[%c0_23, %c0_24] : memref<8x1xf32, #tpu.memory_space<vmem>>, vector<8x1xf32>
      %c0_25 = arith.constant 0 : index
      %c0_26 = arith.constant 0 : index
      %47 = vector.load %arg5[%c0_25, %c0_26] : memref<8x1xf32, #tpu.memory_space<vmem>>, vector<8x1xf32>
      %c0_27 = arith.constant 0 : index
      %c0_28 = arith.constant 0 : index
      %48 = vector.load %arg6[%c0_27, %c0_28] : memref<8x1xf32, #tpu.memory_space<vmem>>, vector<8x1xf32>
      %49 = arith.subf %48, %46 : vector<8x1xf32>
      %50 = arith.addf %46, %47 : vector<8x1xf32>
      %cst_29 = arith.constant 1.000000e-07 : f32
      %51 = vector.broadcast %cst_29 : f32 to vector<8x1xf32>
      %52 = arith.addf %50, %51 : vector<8x1xf32>
      %53 = arith.divf %46, %52 : vector<8x1xf32>
      %54 = arith.addf %46, %49 : vector<8x1xf32>
      %cst_30 = arith.constant 1.000000e-07 : f32
      %55 = vector.broadcast %cst_30 : f32 to vector<8x1xf32>
      %56 = arith.addf %54, %55 : vector<8x1xf32>
      %57 = arith.divf %46, %56 : vector<8x1xf32>
      %cst_31 = arith.constant 2.000000e+00 : f32
      %58 = vector.broadcast %cst_31 : f32 to vector<8x1xf32>
      %59 = arith.mulf %58, %53 : vector<8x1xf32>
      %60 = arith.mulf %59, %57 : vector<8x1xf32>
      %61 = arith.addf %53, %57 : vector<8x1xf32>
      %cst_32 = arith.constant 1.000000e-07 : f32
      %62 = vector.broadcast %cst_32 : f32 to vector<8x1xf32>
      %63 = arith.addf %61, %62 : vector<8x1xf32>
      %64 = arith.divf %60, %63 : vector<8x1xf32>
      %cst_33 = arith.constant dense<0.000000e+00> : vector<1xf32>
      %65 = vector.multi_reduction <add>, %64, %cst_33 [0] : vector<8x1xf32> to vector<1xf32>
      %66 = vector.shape_cast %65 : vector<1xf32> to vector<1x1xf32>
      %cst_34 = arith.constant 1.250000e-01 : f32
      %67 = vector.broadcast %cst_34 : f32 to vector<1x1xf32>
      %68 = arith.mulf %66, %67 : vector<1x1xf32>
      %c0_35 = arith.constant 0 : index
      %c0_36 = arith.constant 0 : index
      %69 = vector.load %arg3[%c0_35, %c0_36] : memref<1x1xf32, #tpu.memory_space<vmem>>, vector<1x1xf32>
      tpu.vector_store %arg3[%c0_35, %c0_36], %68 {strides = array<i32>} : memref<1x1xf32, #tpu.memory_space<vmem>>, vector<1x1xf32>,
    } else {
    }
    return
  }
  func.func @transform_0(%arg0: i32) -> (i32, i32) {
    %c0_i32 = arith.constant 0 : i32
    %c0_i32_0 = arith.constant 0 : i32
    return %c0_i32, %arg0 : i32, i32
  }
  func.func @transform_1(%arg0: i32) -> (i32, i32) {
    %c0_i32 = arith.constant 0 : i32
    %c0_i32_0 = arith.constant 0 : i32
    return %c0_i32, %arg0 : i32, i32
  }
  func.func @transform_2(%arg0: i32) -> (i32, i32) {
    %c0_i32 = arith.constant 0 : i32
    %c0_i32_0 = arith.constant 0 : i32
    %c0_i32_1 = arith.constant 0 : i32
    return %c0_i32, %c0_i32_0 : i32, i32
  }
}

</mosaic_0001>

<llo_original>
// kernel: macro_f1.1
$region0: #{macro_f1.1}
  #allocation0 [shape = 'u32[]', space=smem, size = 0x4, offset = 0x4, fixed_abs, tag = 'smem constant byte address 0x4 - core index']
  #allocation1 [shape = 'u32[72,128]{1,0:T(1,128)}', space=vmem, size = 0x9000, scoped, tag = 'internal scratch']
  #allocation2 [shape = 'f32[8,1]{1,0:T(8,128)}', space=vmem, size = 0x1000, scoped, tag = 'scratch operand']
  #allocation3 [shape = 'f32[8,1]{1,0:T(8,128)}', space=vmem, size = 0x1000, scoped, tag = 'scratch operand']
  #allocation4 [shape = 'f32[8,1]{1,0:T(8,128)}', space=vmem, size = 0x1000, scoped, tag = 'scratch operand']
  %s0 = inlined_call_operand.hbm [shape: f32[8,256], index: 0, kind: input, shape index: {}]
  %s1 = inlined_call_operand.hbm [shape: f32[8,256], index: 1, kind: input, shape index: {}]
  %s2 = inlined_call_operand.hbm [shape: f32[1,1], index: 2, kind: output, shape index: {}]
  %s3 = sld [smem:[#allocation0]]
  $region57: #{macro_f1.1} parent=0
    _
  %s5 = ssub.s32 1, %s3
  %s6 = scalar_select 0, %s5, %s3
  $region1: #{macro_f1.1} parent=0
    #allocation5 [shape = 'u8[8192]{0}', space=vmem, size = 0x2000, scoped, tag = 'input window, operand 0']
    #allocation6 [shape = 's32[2]{0}', space=sflag, size = 0x8, scoped, tag = 'scoped memory for macro_f1.1']
    #allocation7 [shape = 's32[2]{0}', space=sflag, size = 0x8, scoped, tag = 'scoped memory for macro_f1.1']
    #allocation8 [shape = 'u8[8192]{0}', space=vmem, size = 0x2000, scoped, tag = 'input window, operand 1']
    #allocation9 [shape = 's32[2]{0}', space=sflag, size = 0x8, scoped, tag = 'scoped memory for macro_f1.1']
    #allocation10 [shape = 'u8[512]{0}', space=vmem, size = 0x400, scoped, tag = 'output window, operand 0, single buffered']
    %7 = vsyncpa [#allocation6], 0
    %s8 = scalar_lea.sflag [#allocation6], 1
    %9 = vsyncpa %s8, 0
    %10 = vsyncpa [#allocation9], 0
    %s11 = scalar_lea.sflag [#allocation9], 1
    %12 = vsyncpa %s11, 0
    %13 = vsyncpa [#allocation7], 0
    loop: start=0, step=1, limit=4
    $region2: #{macro_f1.1} parent=1 // loop_pre_header
      _
    $region3: #{macro_f1.1} parent=1 // loop_header
      %s15 = sphi 0, %s19
      %p16 = scmp.ge.s32.totalorder %s15, 4
      %s25 = sphi 0, %s27
      %s28 = sphi 0, %s25
      %s29 = sphi 0, %s28
      %s45 = sphi 0, %s29
      %s51 = sphi 0, %s53
      %s54 = sphi 0, %s51
      %s55 = sphi 0, %s54
      %s71 = sphi 0, %s55
      %s75 = sphi 0, %s75
      %s77 = sphi 0, %s75
      %s78 = sphi 0, %s77
      %s92 = sphi 0, %s78
    $region4: #{macro_f1.1} parent=1 // loop_header_branch
      %18 = sbr.rel (%p16) target = $region8
    $region5: #{macro_f1.1} parent=1 // loop_body
      %s20 = ssub.s32 %s15, 1
      %s21 = ssub.s32 %s15, 2
      %s22 = sadd.s32 %s15, 1
      %s23 = ssub.s32 %s15, %s22
      %p24 = scmp.eq.s32.totalorder %s23, 0
      %s26 = sadd.s32 %s25, 1
      %s27 = scalar_select %p24, %s25, %s26
      %p30 = pneg %p24
      %p31 = scmp.eq.s32.totalorder %s15, 1
      %p32 = por %p30, %p31
      %p33 = scmp.ne.s32.totalorder %s25, %s28
      %p34 = scmp.eq.s32.totalorder %s15, 0
      %p35 = por %p33, %p34
      %p36 = scmp.ne.s32.totalorder %s25, %s28
      %p37 = scmp.eq.s32.totalorder %s20, 1
      %p38 = por %p36, %p37
      %p39 = scmp.ne.s32.totalorder %s28, %s29
      %p40 = scmp.eq.s32.totalorder %s20, 0
      %p41 = por %p39, %p40
      %p42 = scmp.ne.s32.totalorder %s28, %s29
      %p43 = scmp.eq.s32.totalorder %s21, 1
      %p44 = por %p42, %p43
      %p46 = scmp.ne.s32.totalorder %s29, %s45
      %p47 = scmp.eq.s32.totalorder %s21, 0
      %p48 = por %p46, %p47
      %s49 = ssub.s32 %s15, %s22
      %p50 = scmp.eq.s32.totalorder %s49, 0
      %s52 = sadd.s32 %s51, 1
      %s53 = scalar_select %p50, %s51, %s52
      %p56 = pneg %p50
      %p57 = scmp.eq.s32.totalorder %s15, 1
      %p58 = por %p56, %p57
      %p59 = scmp.ne.s32.totalorder %s51, %s54
      %p60 = scmp.eq.s32.totalorder %s15, 0
      %p61 = por %p59, %p60
      %p62 = scmp.ne.s32.totalorder %s51, %s54
      %p63 = scmp.eq.s32.totalorder %s20, 1
      %p64 = por %p62, %p63
      %p65 = scmp.ne.s32.totalorder %s54, %s55
      %p66 = scmp.eq.s32.totalorder %s20, 0
      %p67 = por %p65, %p66
      %p68 = scmp.ne.s32.totalorder %s54, %s55
      %p69 = scmp.eq.s32.totalorder %s21, 1
      %p70 = por %p68, %p69
      %p72 = scmp.ne.s32.totalorder %s55, %s71
      %p73 = scmp.eq.s32.totalorder %s21, 0
      %p74 = por %p72, %p73
      %s76 = sadd.s32 %s75, 1
      %p79 = scmp.eq.s32.totalorder %s15, 1
      %p80 = scmp.ne.s32.totalorder %s75, %s77
      %p81 = scmp.eq.s32.totalorder %s15, 0
      %p82 = por %p80, %p81
      %p83 = scmp.ne.s32.totalorder %s75, %s77
      %p84 = scmp.eq.s32.totalorder %s20, 1
      %p85 = por %p83, %p84
      %p86 = scmp.ne.s32.totalorder %s77, %s78
      %p87 = scmp.eq.s32.totalorder %s20, 0
      %p88 = por %p86, %p87
      %p89 = scmp.ne.s32.totalorder %s77, %s78
      %p90 = scmp.eq.s32.totalorder %s21, 1
      %p91 = por %p89, %p90
      %p93 = scmp.ne.s32.totalorder %s78, %s92
      %p94 = scmp.eq.s32.totalorder %s21, 0
      %p95 = por %p93, %p94
      %p96 = scmp.le.s32.totalorder 1, %s15
      %p97 = scmp.lt.s32.totalorder %s15, 3
      %p98 = pnand %p96, %p97
      %p99 = pneg %p98
      // Predicated region
      $region9: #{macro_f1.1} parent=5 // pred_check
        _
      $region10: #{macro_f1.1} parent=5 // pred_check_branch
        %101 = sbr.rel (%p98) target = $region12
      $region11: #{macro_f1.1} parent=5 // pred_region
        %s102 = ssub.s32 %s15, 1
      $region12: #{macro_f1.1} parent=5 // pred_fallthru
        _
      %p103 = scmp.lt.s32.totalorder %s15, 2
      // Predicated region
      $region13: #{macro_f1.1} parent=5 // pred_check
        %p104 = pneg %p103
      $region14: #{macro_f1.1} parent=5 // pred_check_branch
        %106 = sbr.rel (%p104) target = $region16
      $region15: #{macro_f1.1} parent=5 // pred_region
        // Predicated region
        $region17: #{macro_f1.1} parent=15 // pred_check
          %p107 = pneg %p35
        $region18: #{macro_f1.1} parent=15 // pred_check_branch
          %109 = sbr.rel (%p107) target = $region20
        $region19: #{macro_f1.1} parent=15 // pred_region
          %s110 = sand.u32 %s25, 1
          %s111 = scalar_lea.sflag [#allocation6], %s110
          %s112 = sand.u32 %s25, 1
          %s113 = smul.addr %s112, 8
          %s114 = scalar_lea.vmem [#allocation5], %s113
          %116 = vsyncadd %s111, 0
          %s117 = smul.addr %s15, 8
          %s118 = scalar_lea.hbm %s0, %s117
          %s120 = sshll.u32 %s118, 4
          %s121 = int_to_ptr.hbm [resolvable:$true] %s120
          %s122 = sshll.u32 %s114, 4
          %s123 = int_to_ptr.vmem [resolvable:$true] %s122
          %125 = dma.hbm_to_vmem [thread:$0]  %s121, 128, %s123, %s111
        $region20: #{macro_f1.1} parent=15 // pred_fallthru
          _
        // Predicated region
        $region21: #{macro_f1.1} parent=15 // pred_check
          %p126 = pneg %p61
        $region22: #{macro_f1.1} parent=15 // pred_check_branch
          %128 = sbr.rel (%p126) target = $region24
        $region23: #{macro_f1.1} parent=15 // pred_region
          %s129 = sand.u32 %s51, 1
          %s130 = scalar_lea.sflag [#allocation9], %s129
          %s131 = sand.u32 %s51, 1
          %s132 = smul.addr %s131, 8
          %s133 = scalar_lea.vmem [#allocation8], %s132
          %135 = vsyncadd %s130, 0
          %s136 = smul.addr %s15, 8
          %s137 = scalar_lea.hbm %s1, %s136
          %s139 = sshll.u32 %s137, 4
          %s140 = int_to_ptr.hbm [resolvable:$true] %s139
          %s141 = sshll.u32 %s133, 4
          %s142 = int_to_ptr.vmem [resolvable:$true] %s141
          %144 = dma.hbm_to_vmem [thread:$0]  %s140, 128, %s142, %s130
        $region24: #{macro_f1.1} parent=15 // pred_fallthru
          _
      $region16: #{macro_f1.1} parent=5 // pred_fallthru
        _
      %p145 = scmp.le.s32.totalorder 1, %s15
      %p146 = scmp.lt.s32.totalorder %s15, 3
      %p147 = pnand %p145, %p146
      %p148 = pneg %p147
      // Predicated region
      $region25: #{macro_f1.1} parent=5 // pred_check
        _
      $region26: #{macro_f1.1} parent=5 // pred_check_branch
        %150 = sbr.rel (%p147) target = $region28
      $region27: #{macro_f1.1} parent=5 // pred_region
        %s151 = ssub.s32 %s15, 1
        %s152 = sand.u32 %s28, 1
        %s153 = scalar_lea.sflag [#allocation6], %s152
        %s154 = sand.u32 %s28, 1
        %s155 = smul.addr %s154, 8
        %s156 = scalar_lea.vmem [#allocation5], %s155
        // Predicated region
        $region29: #{macro_f1.1} parent=27 // pred_check
          %p157 = pneg %p41
        $region30: #{macro_f1.1} parent=27 // pred_check_branch
          %159 = sbr.rel (%p157) target = $region32
        $region31: #{macro_f1.1} parent=27 // pred_region
          %161 = dma.done %s153, 128
        $region32: #{macro_f1.1} parent=27 // pred_fallthru
          _
        %s162 = sand.u32 %s54, 1
        %s163 = scalar_lea.sflag [#allocation9], %s162
        %s164 = sand.u32 %s54, 1
        %s165 = smul.addr %s164, 8
        %s166 = scalar_lea.vmem [#allocation8], %s165
        // Predicated region
        $region33: #{macro_f1.1} parent=27 // pred_check
          %p167 = pneg %p67
        $region34: #{macro_f1.1} parent=27 // pred_check_branch
          %169 = sbr.rel (%p167) target = $region36
        $region35: #{macro_f1.1} parent=27 // pred_region
          %171 = dma.done %s163, 128
        $region36: #{macro_f1.1} parent=27 // pred_fallthru
          _
        %s172 = sand.u32 %s28, 1
        %s173 = scalar_lea.sflag [#allocation6], %s172
        %s174 = sand.u32 %s28, 1
        %s175 = smul.addr %s174, 8
        %s176 = scalar_lea.vmem [#allocation5], %s175
        %p177 = pneg %p41
        %p178 = pneg %p38
        %s179 = sand.u32 %s54, 1
        %s180 = scalar_lea.sflag [#allocation9], %s179
        %s181 = sand.u32 %s54, 1
        %s182 = smul.addr %s181, 8
        %s183 = scalar_lea.vmem [#allocation8], %s182
        %p184 = pneg %p67
        %p185 = pneg %p64
        %p186 = pneg %p88
        %p187 = pneg %p85
        %p188 = scmp.eq.s32.totalorder %s20, 0
        // Predicated region
        $region37: #{macro_f1.1} parent=27 // pred_check
          %p189 = pneg %p188
        $region38: #{macro_f1.1} parent=27 // pred_check_branch
          %191 = sbr.rel (%p189) target = $region40
        $region39: #{macro_f1.1} parent=27 // pred_region
          %vm192 = vcmask 7168
          %193 = vst.msk [vmem:[#allocation2] sm:$0xff] %vm192, 0.0
          %194 = vst.msk [vmem:[#allocation3] sm:$0xff] %vm192, 0.0
          %195 = vst.msk [vmem:[#allocation4] sm:$0xff] %vm192, 0.0
        $region40: #{macro_f1.1} parent=27 // pred_fallthru
          _
        %v196 = vld [vmem:[%s156] sm:$0xff]
        %v197 = vld [vmem:[%s166] sm:$0xff]
        %v198 = vlaneseq
        %v199 = vshrl.u32 %v198, 7
        %v200 = vrot.slane %v196, 4
        %v201 = vmax.f32 %v196, %v200
        %v202 = vrot.slane %v201, 2
        %v203 = vmax.f32 %v201, %v202
        %v204 = vrot.slane %v203, 1
        %v205 = vmax.f32 %v203, %v204
        %vm206 = vcmp.eq.f32.partialorder %v196, %v205
        %v207 = vsel %vm206, %v199, 8
        %v208 = vrot.slane %v207, 4
        %vm209 = vcmp.lt.s32.totalorder %v207, %v208
        %v210 = vsel %vm209, %v207, %v208
        %v211 = vrot.slane %v210, 2
        %vm212 = vcmp.lt.s32.totalorder %v210, %v211
        %v213 = vsel %vm212, %v210, %v211
        %v214 = vrot.slane %v213, 1
        %vm215 = vcmp.lt.s32.totalorder %v213, %v214
        %v216 = vsel %vm215, %v213, %v214
        %vm217 = vcmp.eq.s32.totalorder %v199, %v216
        %v218 = vsel %vm217, 1, 0
        %v219 = vcvt.s32.f32 %v218
        %vm220 = vcmp.eq.f32.partialorder %v197, 1.0
        %v221 = vsel %vm220, 1, 0
        %v222 = vcvt.s32.f32 %v221
        %vm223 = vcmp.eq.f32.partialorder %v197, 0.0
        %v224 = vsel %vm223, 1, 0
        %v225 = vcvt.s32.f32 %v224
        %v226 = vld [vmem:[#allocation2] sm:$0xff]
        %v227 = vmul.f32 %v219, %v222
        %228 = vadd.xlane.f32.xlu0 %v227
        %v229 = vpop.xlane.xlu0 %228
        %v230 = vadd.f32 %v226, %v229
        %vm231 = vcmask 7168
        %232 = vst.msk [vmem:[#allocation2] sm:$0xff] %vm231, %v230
        %v233 = vld [vmem:[#allocation3] sm:$0xff]
        %v234 = vmul.f32 %v219, %v225
        %235 = vadd.xlane.f32.xlu0 %v234
        %v236 = vpop.xlane.xlu0 %235
        %v237 = vadd.f32 %v233, %v236
        %238 = vst.msk [vmem:[#allocation3] sm:$0xff] %vm231, %v237
        %v239 = vld [vmem:[#allocation4] sm:$0xff]
        %240 = vadd.xlane.f32.xlu0 %v222
        %v241 = vpop.xlane.xlu0 %240
        %v242 = vadd.f32 %v239, %v241
        %243 = vst.msk [vmem:[#allocation4] sm:$0xff] %vm231, %v242
        %p244 = scmp.eq.s32.totalorder %s20, 1
        // Predicated region
        $region41: #{macro_f1.1} parent=27 // pred_check
          %p245 = pneg %p244
        $region42: #{macro_f1.1} parent=27 // pred_check_branch
          %247 = sbr.rel (%p245) target = $region44
        $region43: #{macro_f1.1} parent=27 // pred_region
          %v248 = vld [vmem:[#allocation2] sm:$0xff]
          %v249 = vld [vmem:[#allocation3] sm:$0xff]
          %v250 = vld [vmem:[#allocation4] sm:$0xff]
          %v251 = vsub.f32 %v250, %v248
          %v252 = vadd.f32 %v248, %v249
          %v253 = vadd.f32 %v252, 1e-07
          %v254 = vrcp.pop %v253
          %v255 = vmul.f32 %v253, %v254
          %v256 = vsub.f32 1.0, %v255
          %v257 = vmul.f32 %v254, %v256
          %v258 = vadd.f32 %v254, %v257
          %vm259 = vweird.f32 %v253
          %vm260 = vweird.f32 %v254
          %vm261 = vmor %vm259, %vm260
          %v262 = vsel %vm261, %v254, %v258
          %v263 = vand.u32 2147483647, %v253
          %vm264 = vcmp.eq.f32.partialorder %v263, 8.507059e+37
          %v265 = vand.u32 %v253, 2147483648
          %v266 = vor.u32 1.1754944e-38, %v265
          %v267 = vsel %vm264, %v266, %v262
          %v268 = vmul.f32 %v248, %v267
          %v269 = vadd.f32 %v248, %v251
          %v270 = vadd.f32 %v269, 1e-07
          %v271 = vrcp.pop %v270
          %v272 = vmul.f32 %v270, %v271
          %v273 = vsub.f32 1.0, %v272
          %v274 = vmul.f32 %v271, %v273
          %v275 = vadd.f32 %v271, %v274
          %vm276 = vweird.f32 %v270
          %vm277 = vweird.f32 %v271
          %vm278 = vmor %vm276, %vm277
          %v279 = vsel %vm278, %v271, %v275
          %v280 = vand.u32 2147483647, %v270
          %vm281 = vcmp.eq.f32.partialorder %v280, 8.507059e+37
          %v282 = vand.u32 %v270, 2147483648
          %v283 = vor.u32 1.1754944e-38, %v282
          %v284 = vsel %vm281, %v283, %v279
          %v285 = vmul.f32 %v248, %v284
          %v286 = vmul.f32 %v268, 2.0
          %v287 = vmul.f32 %v286, %v285
          %v288 = vadd.f32 %v268, %v285
          %v289 = vadd.f32 %v288, 1e-07
          %v290 = vrcp.pop %v289
          %v291 = vmul.f32 %v289, %v290
          %v292 = vsub.f32 1.0, %v291
          %v293 = vmul.f32 %v290, %v292
          %v294 = vadd.f32 %v290, %v293
          %vm295 = vweird.f32 %v289
          %vm296 = vweird.f32 %v290
          %vm297 = vmor %vm295, %vm296
          %v298 = vsel %vm297, %v290, %v294
          %v299 = vand.u32 2147483647, %v289
          %vm300 = vcmp.eq.f32.partialorder %v299, 8.507059e+37
          %v301 = vand.u32 %v289, 2147483648
          %v302 = vor.u32 1.1754944e-38, %v301
          %v303 = vsel %vm300, %v302, %v298
          %v304 = vmul.f32 %v287, %v303
          %v305 = vsel %vm231, %v304, 0.0
          %v306 = vrot.slane %v305, 4
          %v307 = vadd.f32 %v305, %v306
          %v308 = vrot.slane %v307, 2
          %v309 = vadd.f32 %v307, %v308
          %v310 = vrot.slane %v309, 1
          %v311 = vadd.f32 %v309, %v310
          %v312 = vmul.f32 %v311, 0.125
          %vm313 = vcmask 0
          %314 = vst.msk [vmem:[#allocation10] sm:$0x1] %vm313, %v312
        $region44: #{macro_f1.1} parent=27 // pred_fallthru
          _
        // Predicated region
        $region45: #{macro_f1.1} parent=27 // pred_check
          %p315 = pneg %p85
        $region46: #{macro_f1.1} parent=27 // pred_check_branch
          %317 = sbr.rel (%p315) target = $region48
        $region47: #{macro_f1.1} parent=27 // pred_region
          %319 = vsyncadd [#allocation7], 0
          %s321 = sshll.u32 [#allocation10], 4
          %s322 = int_to_ptr.vmem [resolvable:$true] %s321
          %s323 = sshll.u32 %s2, 4
          %s324 = int_to_ptr.hbm [resolvable:$true] %s323
          %326 = dma.vmem_to_hbm [thread:$0]  %s322, 16, %s324, [#allocation7]
        $region48: #{macro_f1.1} parent=27 // pred_fallthru
          _
        // Predicated region
        $region49: #{macro_f1.1} parent=27 // pred_check
          %p327 = pneg %p85
        $region50: #{macro_f1.1} parent=27 // pred_check_branch
          %329 = sbr.rel (%p327) target = $region52
        $region51: #{macro_f1.1} parent=27 // pred_region
          %331 = dma.done [#allocation7], 16
        $region52: #{macro_f1.1} parent=27 // pred_fallthru
          _
      $region28: #{macro_f1.1} parent=5 // pred_fallthru
        _
      %p332 = scmp.le.s32.totalorder 2, %s15
      // Predicated region
      $region53: #{macro_f1.1} parent=5 // pred_check
        %p333 = pneg %p332
      $region54: #{macro_f1.1} parent=5 // pred_check_branch
        %335 = sbr.rel (%p333) target = $region56
      $region55: #{macro_f1.1} parent=5 // pred_region
        %s336 = ssub.s32 %s15, 2
      $region56: #{macro_f1.1} parent=5 // pred_fallthru
        _
    $region6: #{macro_f1.1} parent=1 // loop_footer
      %s19 = sadd.s32 1, %s15
    $region7: #{macro_f1.1} parent=1 // loop_footer_branch
      %14 = sbr.rel target = $region3
    $region8: #{macro_f1.1} parent=1 // loop_exit
      _
    %337 = vsyncpa [#allocation6], 1
    %s338 = scalar_lea.sflag [#allocation6], 1
    %339 = vsyncpa %s338, 1
    %340 = vsyncpa [#allocation9], 1
    %s341 = scalar_lea.sflag [#allocation9], 1
    %342 = vsyncpa %s341, 1
    %343 = vsyncpa [#allocation7], 1
    %s344 = scalar_lea.sflag [#allocation7], 1
    %345 = vsyncpa %s344, 1

</llo_original>
